<compile_context>
chip_gen: v7x
topology: tpu7x:2x2x1
jax: 0.10.0
libtpu: 0.0.40
codegen_flags: <defaults>
</compile_context>

<pallas_src>
import functools

import numpy as np
import jax
import jax.numpy as jnp
from jax.experimental import pallas as pl
from jax.experimental.pallas import tpu as pltpu


def _round_up(x, m):
    return (x + m - 1) // m * m


def _cdiv(a, b):
    return -(-a // b)


# ----------------------------------------------------------------------------------
# Fused kernel: 3 folded convs + head = 5 matmuls per batch tile.
# ----------------------------------------------------------------------------------
def _make_kernel(dueling, action_size):
    bf16 = jnp.bfloat16

    def kernel(x_ref, wc1, bc1, wc2, bc2, wc3, bc3, w1, b1, w2, b2, o_ref):
        def dense_relu(a, w_ref, b_ref):
            y = jnp.dot(a, w_ref[...], preferred_element_type=jnp.float32)
            # bias + ReLU in f32, single f32->bf16 cast per layer for the next matmul.
            return jnp.maximum(y + b_ref[...], 0.0).astype(bf16)

        a = x_ref[...]                        # (TB, P*C) bf16
        a = dense_relu(a, wc1, bc1)           # folded conv1 -> (TB, P*32)
        a = dense_relu(a, wc2, bc2)           # folded conv2 -> (TB, P*64)
        a = dense_relu(a, wc3, bc3)           # folded conv3 -> flattened feats (TB, 128)
        h = dense_relu(a, w1, b1)             # head layer 1 (value|advantage fused)
        res = jnp.dot(h, w2[...], preferred_element_type=jnp.float32) + b2[...]
        if dueling:
            v = res[:, 0:1]
            adv = res[:, 1:1 + action_size]
            res = v + (adv - jnp.mean(adv, axis=-1, keepdims=True))
        o_ref[...] = res.astype(o_ref.dtype)

    return kernel


def _full_spec(arr):
    nd = arr.ndim
    return pl.BlockSpec(arr.shape, lambda i, _nd=nd: (0,) * _nd)


# ----------------------------------------------------------------------------------
# One-time parameter packing (outside the jitted forward).
# ----------------------------------------------------------------------------------
def pack_params(params, input_shape, dueling):
    """Fold convs into dense (P*Cin, P*Cout) mats and pack head weights (bf16)."""
    _, C, H, W = input_shape
    P = H * W
    assert 64 * P == 128, "feature_size (128) hard-codes 64 * H * W == 128"

    def fold_conv(w):                       # (Cout, Cin, 3, 3) -> (P*Cin, P*Cout) bf16
        cout, cin = w.shape[0], w.shape[1]
        zero = jnp.zeros((cin, cout), jnp.float32)
        rows = []
        for q in range(P):                  # input spatial position  (row block)
            hq, wq = divmod(q, W)
            cols = []
            for p in range(P):              # output spatial position (col block)
                dy, dx = hq - p // W, wq - p % W
                if abs(dy) <= 1 and abs(dx) <= 1:
                    cols.append(jnp.asarray(w[:, :, dy + 1, dx + 1].T, jnp.float32))
                else:
                    cols.append(zero)
            rows.append(jnp.concatenate(cols, axis=1))
        return jnp.concatenate(rows, axis=0).astype(jnp.bfloat16)

    def conv_bias(b):                       # (Cout,) -> (1, P*Cout): one copy per pos.
        return jnp.tile(jnp.asarray(b, jnp.float32).reshape(1, -1), (1, P))

    def bias(b):
        return jnp.asarray(b, jnp.float32).reshape(1, -1)

    def head_w1(w):   # torch (out, 64*P): fold the (C,H,W)-flatten perm -> (P*64, out)
        out_dim, f = w.shape
        assert f == 64 * P
        return (jnp.transpose(jnp.asarray(w).reshape(out_dim, 64, P), (2, 1, 0))
                .reshape(P * 64, out_dim).astype(jnp.bfloat16))

    packed = {
        "wc1": fold_conv(params["c1w"]), "bc1": conv_bias(params["c1b"]),
        "wc2": fold_conv(params["c2w"]), "bc2": conv_bias(params["c2b"]),
        "wc3": fold_conv(params["c3w"]), "bc3": conv_bias(params["c3b"]),
    }
    if dueling:
        A = params["a2w"].shape[0]
        hv, ha = params["v1w"].shape[0], params["a1w"].shape[0]
        packed["w1"] = jnp.concatenate(
            [head_w1(params["v1w"]), head_w1(params["a1w"])], axis=-1)
        packed["b1"] = jnp.concatenate(
            [bias(params["v1b"]), bias(params["a1b"])], axis=-1)
        # Block-diagonal layer 2: output columns = [value, advantage_0..A-1].
        w2 = jnp.zeros((hv + ha, 1 + A), jnp.float32)
        w2 = w2.at[:hv, 0].set(params["v2w"][0])
        w2 = w2.at[hv:, 1:].set(params["a2w"].T)
        packed["w2"] = w2.astype(jnp.bfloat16)
        packed["b2"] = jnp.concatenate(
            [bias(params["v2b"]), bias(params["a2b"])], axis=-1)
    else:
        packed["w1"] = head_w1(params["f1w"])
        packed["b1"] = bias(params["f1b"])
        packed["w2"] = jnp.asarray(params["f2w"]).T.astype(jnp.bfloat16)
        packed["b2"] = bias(params["f2b"])
    return packed


# ----------------------------------------------------------------------------------
# Batch-tile selection: low padding waste, >=2 steps for v7x megacore, cap TB=1024.
# ----------------------------------------------------------------------------------
def _pick_tiles(batch):
    b8 = _round_up(max(batch, 1), 8)
    if b8 < 256:
        n_steps = 1                      # tiny batch: one fat step (overhead-bound)
    else:
        n_steps = max(2, _cdiv(b8, 1024))  # >=2 steps so both v7x TCs get work
    tb = _round_up(_cdiv(b8, n_steps), 8)
    return tb, n_steps


@functools.partial(jax.jit, static_argnames=("dueling",))
def conv_dqn_forward(packed, x_nchw, *, dueling=False):
    B, C, H, W = x_nchw.shape
    P = H * W
    TB, n_steps = _pick_tiles(B)
    B_pad = TB * n_steps

    n_out2 = packed["w2"].shape[-1]      # 1 + A (dueling) or A
    A = n_out2 - 1 if dueling else n_out2

    # NCHW -> flat (B_pad, P*C) bf16; row b = [x[b,:,p=0], x[b,:,p=1], ...].
    x2d = x_nchw.astype(jnp.bfloat16).transpose(0, 2, 3, 1).reshape(B, P * C)
    x2d = jnp.pad(x2d, ((0, B_pad - B), (0, 0)))

    kernel = _make_kernel(dueling, A)
    weights = (packed["wc1"], packed["bc1"], packed["wc2"], packed["bc2"],
               packed["wc3"], packed["bc3"], packed["w1"], packed["b1"],
               packed["w2"], packed["b2"])

    out = pl.pallas_call(
        kernel,
        out_shape=jax.ShapeDtypeStruct((B_pad, A), jnp.float32),
        grid=(n_steps,),
        in_specs=[pl.BlockSpec((TB, P * C), lambda i: (i, 0))]
                 + [_full_spec(w) for w in weights],
        out_specs=pl.BlockSpec((TB, A), lambda i: (i, 0)),
        compiler_params=pltpu.CompilerParams(dimension_semantics=("parallel",)),
    )(x2d, *weights)
    return out[:B]


# ----------------------------------------------------------------------------------
# Deterministic parameter init (same shapes as the torch module's __init__).
# ----------------------------------------------------------------------------------
def init_params(key, input_channels, action_size, dueling):
    ks = jax.random.split(key, 16)

    def conv_w(k, cout, cin):
        return jax.random.normal(k, (cout, cin, 3, 3), jnp.float32) * np.sqrt(
            2.0 / (cin * 9))

    def lin_w(k, cout, cin):
        return jax.random.normal(k, (cout, cin), jnp.float32) * np.sqrt(2.0 / cin)

    def bias(k, n):
        return jax.random.normal(k, (n,), jnp.float32) * 0.05

    p = {
        "c1w": conv_w(ks[0], 32, input_channels), "c1b": bias(ks[1], 32),
        "c2w": conv_w(ks[2], 64, 32), "c2b": bias(ks[3], 64),
        "c3w": conv_w(ks[4], 64, 64), "c3b": bias(ks[5], 64),
    }
    if dueling:
        p.update({
            "v1w": lin_w(ks[6], 128, 128), "v1b": bias(ks[7], 128),
            "v2w": lin_w(ks[8], 1, 128), "v2b": bias(ks[9], 1),
            "a1w": lin_w(ks[10], 128, 128), "a1b": bias(ks[11], 128),
            "a2w": lin_w(ks[12], action_size, 128), "a2b": bias(ks[13], action_size),
        })
    else:
        p.update({
            "f1w": lin_w(ks[6], 128, 128), "f1b": bias(ks[7], 128),
            "f2w": lin_w(ks[8], action_size, 128), "f2b": bias(ks[9], action_size),
        })
    return p


# Pure-JAX reference reproducing the PyTorch forward (full f32 HIGHEST precision).
def reference_forward(params, x_nchw, state_features=None, dueling=False):
    hp = jax.lax.Precision.HIGHEST
    y = x_nchw.astype(jnp.float32)
    for wk, bk in (("c1w", "c1b"), ("c2w", "c2b"), ("c3w", "c3b")):
        y = jax.lax.conv_general_dilated(
            y, params[wk], window_strides=(1, 1), padding=((1, 1), (1, 1)),
            dimension_numbers=("NCHW", "OIHW", "NCHW"), precision=hp)
        y = jnp.maximum(y + params[bk][None, :, None, None], 0.0)
    f = y.reshape(y.shape[0], -1)
    if state_features is not None:
        f = jnp.concatenate([f, state_features], axis=1)
    if dueling:
        hv = jnp.maximum(jnp.dot(f, params["v1w"].T, precision=hp) + params["v1b"], 0.0)
        v = jnp.dot(hv, params["v2w"].T, precision=hp) + params["v2b"]
        ha = jnp.maximum(jnp.dot(f, params["a1w"].T, precision=hp) + params["a1b"], 0.0)
        a = jnp.dot(ha, params["a2w"].T, precision=hp) + params["a2b"]
        return v + (a - jnp.mean(a, axis=1, keepdims=True))
    h = jnp.maximum(jnp.dot(f, params["f1w"].T, precision=hp) + params["f1b"], 0.0)
    return jnp.dot(h, params["f2w"].T, precision=hp) + params["f2b"]


if __name__ == "__main__":
    key = jax.random.PRNGKey(0)
    k_x, k_p1, k_p2 = jax.random.split(key, 3)

    # feature_size is hard-coded to 128 = 64 * H * W  ->  spatial must be H*W == 2.
    C, H, W = 4, 2, 1
    action_size = 6

    # NOTE: matmuls are bf16-in / f32-accumulate while the reference is f32 HIGHEST;
    # the 2e-2 tolerance covers the resulting ~1e-2-level Q-value drift (inference-OK).
    for dueling, kp in ((False, k_p1), (True, k_p2)):
        params = init_params(kp, C, action_size, dueling)
        packed = pack_params(params, (1, C, H, W), dueling)    # one-time packing
        for B in (2, 37):                                      # 37 exercises row padding
            x = jax.random.normal(jax.random.fold_in(k_x, B), (B, C, H, W), jnp.float32)
            out = jax.block_until_ready(conv_dqn_forward(packed, x, dueling=dueling))
            ref = reference_forward(params, x, None, dueling)
            np.testing.assert_allclose(np.asarray(out), np.asarray(ref),
                                       rtol=2e-2, atol=2e-2)

    print("KERNEL_OK")
</pallas_src>

<mosaic_0001>
module attributes {stable_mosaic.version = 11 : i64} {
  func.func @kernel(%arg0: i32, %arg1: memref<8x8xbf16, #tpu.memory_space<vmem>>, %arg2: memref<8x64xbf16, #tpu.memory_space<vmem>>, %arg3: memref<1x64xf32, #tpu.memory_space<vmem>>, %arg4: memref<64x128xbf16, #tpu.memory_space<vmem>>, %arg5: memref<1x128xf32, #tpu.memory_space<vmem>>, %arg6: memref<128x128xbf16, #tpu.memory_space<vmem>>, %arg7: memref<1x128xf32, #tpu.memory_space<vmem>>, %arg8: memref<128x128xbf16, #tpu.memory_space<vmem>>, %arg9: memref<1x128xf32, #tpu.memory_space<vmem>>, %arg10: memref<128x6xbf16, #tpu.memory_space<vmem>>, %arg11: memref<1x6xf32, #tpu.memory_space<vmem>>, %arg12: memref<8x6xf32, #tpu.memory_space<vmem>>) attributes {dimension_semantics = [#tpu.dimension_semantics<parallel>], iteration_bounds = array<i64: 1>, scalar_prefetch = 0 : i64, scratch_operands = 0 : i64, tpu.core_type = #tpu.core_type<tc>, window_params = [{transform_indices = @transform_0, window_bounds = array<i64: 8, 8>}, {pipeline_mode = #tpu.pipeline_mode<synchronous>, transform_indices = @transform_1, window_bounds = array<i64: 8, 64>}, {pipeline_mode = #tpu.pipeline_mode<synchronous>, transform_indices = @transform_2, window_bounds = array<i64: 1, 64>}, {pipeline_mode = #tpu.pipeline_mode<synchronous>, transform_indices = @transform_3, window_bounds = array<i64: 64, 128>}, {pipeline_mode = #tpu.pipeline_mode<synchronous>, transform_indices = @transform_4, window_bounds = array<i64: 1, 128>}, {pipeline_mode = #tpu.pipeline_mode<synchronous>, transform_indices = @transform_5, window_bounds = array<i64: 128, 128>}, {pipeline_mode = #tpu.pipeline_mode<synchronous>, transform_indices = @transform_6, window_bounds = array<i64: 1, 128>}, {pipeline_mode = #tpu.pipeline_mode<synchronous>, transform_indices = @transform_7, window_bounds = array<i64: 128, 128>}, {pipeline_mode = #tpu.pipeline_mode<synchronous>, transform_indices = @transform_8, window_bounds = array<i64: 1, 128>}, {pipeline_mode = #tpu.pipeline_mode<synchronous>, transform_indices = @transform_9, window_bounds = array<i64: 128, 6>}, {pipeline_mode = #tpu.pipeline_mode<synchronous>, transform_indices = @transform_10, window_bounds = array<i64: 1, 6>}, {transform_indices = @transform_11, window_bounds = array<i64: 8, 6>}]} {
    %c0 = arith.constant 0 : index
    %c0_0 = arith.constant 0 : index
    %0 = vector.load %arg1[%c0, %c0_0] : memref<8x8xbf16, #tpu.memory_space<vmem>>, vector<8x8xbf16>
    %c0_1 = arith.constant 0 : index
    %c0_2 = arith.constant 0 : index
    %1 = vector.load %arg2[%c0_1, %c0_2] : memref<8x64xbf16, #tpu.memory_space<vmem>>, vector<8x64xbf16>
    %cst = arith.constant dense<0.000000e+00> : vector<8x64xf32>
    %2 = tpu.matmul %0, %1, %cst {dimension_numbers = #tpu.dot_dimension_numbers<[1], [0], [0], [1], [0, 0, 1, 1], [], []>} : vector<8x8xbf16>, vector<8x64xbf16>, vector<8x64xf32> -> vector<8x64xf32>
    %c0_3 = arith.constant 0 : index
    %c0_4 = arith.constant 0 : index
    %3 = vector.load %arg3[%c0_3, %c0_4] : memref<1x64xf32, #tpu.memory_space<vmem>>, vector<1x64xf32>
    %4 = vector.broadcast %3 : vector<1x64xf32> to vector<8x64xf32>
    %5 = arith.addf %2, %4 : vector<8x64xf32>
    %cst_5 = arith.constant 0.000000e+00 : f32
    %6 = vector.broadcast %cst_5 : f32 to vector<8x64xf32>
    %7 = arith.maximumf %5, %6 : vector<8x64xf32>
    %8 = arith.truncf %7 : vector<8x64xf32> to vector<8x64xbf16>
    %c0_6 = arith.constant 0 : index
    %c0_7 = arith.constant 0 : index
    %9 = vector.load %arg4[%c0_6, %c0_7] : memref<64x128xbf16, #tpu.memory_space<vmem>>, vector<64x128xbf16>
    %cst_8 = arith.constant dense<0.000000e+00> : vector<8x128xf32>
    %10 = tpu.matmul %8, %9, %cst_8 {dimension_numbers = #tpu.dot_dimension_numbers<[1], [0], [0], [1], [0, 0, 1, 1], [], []>} : vector<8x64xbf16>, vector<64x128xbf16>, vector<8x128xf32> -> vector<8x128xf32>
    %c0_9 = arith.constant 0 : index
    %c0_10 = arith.constant 0 : index
    %11 = vector.load %arg5[%c0_9, %c0_10] : memref<1x128xf32, #tpu.memory_space<vmem>>, vector<1x128xf32>
    %12 = vector.broadcast %11 : vector<1x128xf32> to vector<8x128xf32>
    %13 = arith.addf %10, %12 : vector<8x128xf32>
    %cst_11 = arith.constant 0.000000e+00 : f32
    %14 = vector.broadcast %cst_11 : f32 to vector<8x128xf32>
    %15 = arith.maximumf %13, %14 : vector<8x128xf32>
    %16 = arith.truncf %15 : vector<8x128xf32> to vector<8x128xbf16>
    %c0_12 = arith.constant 0 : index
    %c0_13 = arith.constant 0 : index
    %17 = vector.load %arg6[%c0_12, %c0_13] : memref<128x128xbf16, #tpu.memory_space<vmem>>, vector<128x128xbf16>
    %cst_14 = arith.constant dense<0.000000e+00> : vector<8x128xf32>
    %18 = tpu.matmul %16, %17, %cst_14 {dimension_numbers = #tpu.dot_dimension_numbers<[1], [0], [0], [1], [0, 0, 1, 1], [], []>} : vector<8x128xbf16>, vector<128x128xbf16>, vector<8x128xf32> -> vector<8x128xf32>
    %c0_15 = arith.constant 0 : index
    %c0_16 = arith.constant 0 : index
    %19 = vector.load %arg7[%c0_15, %c0_16] : memref<1x128xf32, #tpu.memory_space<vmem>>, vector<1x128xf32>
    %20 = vector.broadcast %19 : vector<1x128xf32> to vector<8x128xf32>
    %21 = arith.addf %18, %20 : vector<8x128xf32>
    %cst_17 = arith.constant 0.000000e+00 : f32
    %22 = vector.broadcast %cst_17 : f32 to vector<8x128xf32>
    %23 = arith.maximumf %21, %22 : vector<8x128xf32>
    %24 = arith.truncf %23 : vector<8x128xf32> to vector<8x128xbf16>
    %c0_18 = arith.constant 0 : index
    %c0_19 = arith.constant 0 : index
    %25 = vector.load %arg8[%c0_18, %c0_19] : memref<128x128xbf16, #tpu.memory_space<vmem>>, vector<128x128xbf16>
    %cst_20 = arith.constant dense<0.000000e+00> : vector<8x128xf32>
    %26 = tpu.matmul %24, %25, %cst_20 {dimension_numbers = #tpu.dot_dimension_numbers<[1], [0], [0], [1], [0, 0, 1, 1], [], []>} : vector<8x128xbf16>, vector<128x128xbf16>, vector<8x128xf32> -> vector<8x128xf32>
    %c0_21 = arith.constant 0 : index
    %c0_22 = arith.constant 0 : index
    %27 = vector.load %arg9[%c0_21, %c0_22] : memref<1x128xf32, #tpu.memory_space<vmem>>, vector<1x128xf32>
    %28 = vector.broadcast %27 : vector<1x128xf32> to vector<8x128xf32>
    %29 = arith.addf %26, %28 : vector<8x128xf32>
    %cst_23 = arith.constant 0.000000e+00 : f32
    %30 = vector.broadcast %cst_23 : f32 to vector<8x128xf32>
    %31 = arith.maximumf %29, %30 : vector<8x128xf32>
    %32 = arith.truncf %31 : vector<8x128xf32> to vector<8x128xbf16>
    %c0_24 = arith.constant 0 : index
    %c0_25 = arith.constant 0 : index
    %33 = vector.load %arg10[%c0_24, %c0_25] : memref<128x6xbf16, #tpu.memory_space<vmem>>, vector<128x6xbf16>
    %cst_26 = arith.constant dense<0.000000e+00> : vector<8x6xf32>
    %34 = tpu.matmul %32, %33, %cst_26 {dimension_numbers = #tpu.dot_dimension_numbers<[1], [0], [0], [1], [0, 0, 1, 1], [], []>} : vector<8x128xbf16>, vector<128x6xbf16>, vector<8x6xf32> -> vector<8x6xf32>
    %c0_27 = arith.constant 0 : index
    %c0_28 = arith.constant 0 : index
    %35 = vector.load %arg11[%c0_27, %c0_28] : memref<1x6xf32, #tpu.memory_space<vmem>>, vector<1x6xf32>
    %36 = vector.broadcast %35 : vector<1x6xf32> to vector<8x6xf32>
    %37 = arith.addf %34, %36 : vector<8x6xf32>
    %c0_29 = arith.constant 0 : index
    %c0_30 = arith.constant 0 : index
    %38 = vector.load %arg12[%c0_29, %c0_30] : memref<8x6xf32, #tpu.memory_space<vmem>>, vector<8x6xf32>
    tpu.vector_store %arg12[%c0_29, %c0_30], %37 {strides = array<i32>} : memref<8x6xf32, #tpu.memory_space<vmem>>, vector<8x6xf32>,
    return
  }
  func.func @transform_0(%arg0: i32) -> (i32, i32) {
    %c0_i32 = arith.constant 0 : i32
    %c0_i32_0 = arith.constant 0 : i32
    return %arg0, %c0_i32 : i32, i32
  }
  func.func @transform_1(%arg0: i32) -> (i32, i32) {
    %c0_i32 = arith.constant 0 : i32
    %c0_i32_0 = arith.constant 0 : i32
    %c0_i32_1 = arith.constant 0 : i32
    return %c0_i32, %c0_i32_0 : i32, i32
  }
  func.func @transform_2(%arg0: i32) -> (i32, i32) {
    %c0_i32 = arith.constant 0 : i32
    %c0_i32_0 = arith.constant 0 : i32
    %c0_i32_1 = arith.constant 0 : i32
    return %c0_i32, %c0_i32_0 : i32, i32
  }
  func.func @transform_3(%arg0: i32) -> (i32, i32) {
    %c0_i32 = arith.constant 0 : i32
    %c0_i32_0 = arith.constant 0 : i32
    %c0_i32_1 = arith.constant 0 : i32
    return %c0_i32, %c0_i32_0 : i32, i32
  }
  func.func @transform_4(%arg0: i32) -> (i32, i32) {
    %c0_i32 = arith.constant 0 : i32
    %c0_i32_0 = arith.constant 0 : i32
    %c0_i32_1 = arith.constant 0 : i32
    return %c0_i32, %c0_i32_0 : i32, i32
  }
  func.func @transform_5(%arg0: i32) -> (i32, i32) {
    %c0_i32 = arith.constant 0 : i32
    %c0_i32_0 = arith.constant 0 : i32
    %c0_i32_1 = arith.constant 0 : i32
    return %c0_i32, %c0_i32_0 : i32, i32
  }
  func.func @transform_6(%arg0: i32) -> (i32, i32) {
    %c0_i32 = arith.constant 0 : i32
    %c0_i32_0 = arith.constant 0 : i32
    %c0_i32_1 = arith.constant 0 : i32
    return %c0_i32, %c0_i32_0 : i32, i32
  }
  func.func @transform_7(%arg0: i32) -> (i32, i32) {
    %c0_i32 = arith.constant 0 : i32
    %c0_i32_0 = arith.constant 0 : i32
    %c0_i32_1 = arith.constant 0 : i32
    return %c0_i32, %c0_i32_0 : i32, i32
  }
  func.func @transform_8(%arg0: i32) -> (i32, i32) {
    %c0_i32 = arith.constant 0 : i32
    %c0_i32_0 = arith.constant 0 : i32
    %c0_i32_1 = arith.constant 0 : i32
    return %c0_i32, %c0_i32_0 : i32, i32
  }
  func.func @transform_9(%arg0: i32) -> (i32, i32) {
    %c0_i32 = arith.constant 0 : i32
    %c0_i32_0 = arith.constant 0 : i32
    %c0_i32_1 = arith.constant 0 : i32
    return %c0_i32, %c0_i32_0 : i32, i32
  }
  func.func @transform_10(%arg0: i32) -> (i32, i32) {
    %c0_i32 = arith.constant 0 : i32
    %c0_i32_0 = arith.constant 0 : i32
    %c0_i32_1 = arith.constant 0 : i32
    return %c0_i32, %c0_i32_0 : i32, i32
  }
  func.func @transform_11(%arg0: i32) -> (i32, i32) {
    %c0_i32 = arith.constant 0 : i32
    %c0_i32_0 = arith.constant 0 : i32
    return %arg0, %c0_i32 : i32, i32
  }
}

</mosaic_0001>

<llo_original>
// kernel: conv_dqn_forward.1
$region0: #{conv_dqn_forward.1}
  #allocation0 [shape = 'u32[]', space=smem, size = 0x4, offset = 0x4, fixed_abs, tag = 'smem constant byte address 0x4 - core index']
  #allocation1 [shape = 'u32[144,128]{1,0:T(1,128)}', space=vmem, size = 0x12000, scoped, tag = 'internal scratch']
  %s0 = inlined_call_operand.vmem [shape: bf16[8,8], index: 0, kind: input, shape index: {}]
  %s1 = inlined_call_operand.vmem [shape: bf16[8,64], index: 1, kind: input, shape index: {}]
  %s2 = inlined_call_operand.vmem [shape: f32[1,64], index: 2, kind: input, shape index: {}]
  %s3 = inlined_call_operand.vmem [shape: bf16[64,128], index: 3, kind: input, shape index: {}]
  %s4 = inlined_call_operand.vmem [shape: f32[1,128], index: 4, kind: input, shape index: {}]
  %s5 = inlined_call_operand.vmem [shape: bf16[128,128], index: 5, kind: input, shape index: {}]
  %s6 = inlined_call_operand.vmem [shape: f32[1,128], index: 6, kind: input, shape index: {}]
  %s7 = inlined_call_operand.hbm [shape: bf16[128,128], index: 7, kind: input, shape index: {}]
  %s8 = inlined_call_operand.vmem [shape: f32[1,128], index: 8, kind: input, shape index: {}]
  %s9 = inlined_call_operand.vmem [shape: bf16[128,6], index: 9, kind: input, shape index: {}]
  %s10 = inlined_call_operand.vmem [shape: f32[1,6], index: 10, kind: input, shape index: {}]
  %s11 = inlined_call_operand.vmem [shape: f32[8,6], index: 11, kind: output, shape index: {}]
  %s12 = sld [smem:[#allocation0]]
  $region58: #{conv_dqn_forward.1} parent=0
    _
  %s14 = ssub.s32 1, %s12
  %s15 = scalar_select 0, %s14, %s12
  $region1: #{conv_dqn_forward.1} parent=0
    #allocation2 [shape = 'u8[32768]{0}', space=vmem, size = 0x8000, scoped, tag = 'input window, operand 7, single buffered']
    #allocation3 [shape = 's32[1]{0}', space=sflag, size = 0x4, scoped, tag = 'scoped memory for conv_dqn_forward.1']
    %16 = vsyncpa [#allocation3], 0
    // Predicated region
    $region2: #{conv_dqn_forward.1} parent=1 // pred_check
      _
    $region3: #{conv_dqn_forward.1} parent=1 // pred_check_branch
      %18 = sbr.rel (0) target = $region5
    $region4: #{conv_dqn_forward.1} parent=1 // pred_region
      _
    $region5: #{conv_dqn_forward.1} parent=1 // pred_fallthru
      _
    // Predicated region
    $region6: #{conv_dqn_forward.1} parent=1 // pred_check
      _
    $region7: #{conv_dqn_forward.1} parent=1 // pred_check_branch
      %20 = sbr.rel (0) target = $region9
    $region8: #{conv_dqn_forward.1} parent=1 // pred_region
      _
    $region9: #{conv_dqn_forward.1} parent=1 // pred_fallthru
      _
    // Predicated region
    $region10: #{conv_dqn_forward.1} parent=1 // pred_check
      _
    $region11: #{conv_dqn_forward.1} parent=1 // pred_check_branch
      %22 = sbr.rel (0) target = $region13
    $region12: #{conv_dqn_forward.1} parent=1 // pred_region
      _
    $region13: #{conv_dqn_forward.1} parent=1 // pred_fallthru
      _
    // Predicated region
    $region14: #{conv_dqn_forward.1} parent=1 // pred_check
      _
    $region15: #{conv_dqn_forward.1} parent=1 // pred_check_branch
      %24 = sbr.rel (0) target = $region17
    $region16: #{conv_dqn_forward.1} parent=1 // pred_region
      _
    $region17: #{conv_dqn_forward.1} parent=1 // pred_fallthru
      _
    // Predicated region
    $region18: #{conv_dqn_forward.1} parent=1 // pred_check
      _
    $region19: #{conv_dqn_forward.1} parent=1 // pred_check_branch
      %26 = sbr.rel (0) target = $region21
    $region20: #{conv_dqn_forward.1} parent=1 // pred_region
      _
    $region21: #{conv_dqn_forward.1} parent=1 // pred_fallthru
      _
    // Predicated region
    $region22: #{conv_dqn_forward.1} parent=1 // pred_check
      _
    $region23: #{conv_dqn_forward.1} parent=1 // pred_check_branch
      %28 = sbr.rel (0) target = $region25
    $region24: #{conv_dqn_forward.1} parent=1 // pred_region
      _
    $region25: #{conv_dqn_forward.1} parent=1 // pred_fallthru
      _
    // Predicated region
    $region26: #{conv_dqn_forward.1} parent=1 // pred_check
      _
    $region27: #{conv_dqn_forward.1} parent=1 // pred_check_branch
      %30 = sbr.rel (0) target = $region29
    $region28: #{conv_dqn_forward.1} parent=1 // pred_region
      _
    $region29: #{conv_dqn_forward.1} parent=1 // pred_fallthru
      _
    // Predicated region
    $region30: #{conv_dqn_forward.1} parent=1 // pred_check
      _
    $region31: #{conv_dqn_forward.1} parent=1 // pred_check_branch
      %32 = sbr.rel (0) target = $region33
    $region32: #{conv_dqn_forward.1} parent=1 // pred_region
      %s34 = ssub.s32 1024, 1024
      %35 = vsyncadd [#allocation3], %s34
      %s36 = sshll.u32 [#allocation2], 4
      %s37 = int_to_ptr.vmem [resolvable:$true] %s36
      %42 = dma.hbm_to_vmem [thread:$0]  %s7, 1024, %s37, [#allocation3], 64, 64, 4
    $region33: #{conv_dqn_forward.1} parent=1 // pred_fallthru
      _
    // Predicated region
    $region34: #{conv_dqn_forward.1} parent=1 // pred_check
      _
    $region35: #{conv_dqn_forward.1} parent=1 // pred_check_branch
      %44 = sbr.rel (0) target = $region37
    $region36: #{conv_dqn_forward.1} parent=1 // pred_region
      _
    $region37: #{conv_dqn_forward.1} parent=1 // pred_fallthru
      _
    // Predicated region
    $region38: #{conv_dqn_forward.1} parent=1 // pred_check
      _
    $region39: #{conv_dqn_forward.1} parent=1 // pred_check_branch
      %46 = sbr.rel (0) target = $region41
    $region40: #{conv_dqn_forward.1} parent=1 // pred_region
      _
    $region41: #{conv_dqn_forward.1} parent=1 // pred_fallthru
      _
    // Predicated region
    $region42: #{conv_dqn_forward.1} parent=1 // pred_check
      _
    $region43: #{conv_dqn_forward.1} parent=1 // pred_check_branch
      %48 = sbr.rel (0) target = $region45
    $region44: #{conv_dqn_forward.1} parent=1 // pred_region
      _
    $region45: #{conv_dqn_forward.1} parent=1 // pred_fallthru
      _
    // Predicated region
    $region46: #{conv_dqn_forward.1} parent=1 // pred_check
      _
    $region47: #{conv_dqn_forward.1} parent=1 // pred_check_branch
      %50 = sbr.rel (0) target = $region49
    $region48: #{conv_dqn_forward.1} parent=1 // pred_region
      %51 = dma.done [#allocation3], 1024
    $region49: #{conv_dqn_forward.1} parent=1 // pred_fallthru
      _
    %v53 = vld [vmem:[%s0] sm:$0xf]
    %v54 = vld [vmem:[%s1] sm:$0xf]
    %v55 = vld [vmem:[%s2] sm:$0x1]
    %v57 = vlaneseq
    %v58 = vshrl.u32 %v57, 7
    %v59 = vsub.s32 0, %v58
    %v60 = vrot.slane %v55, %v59
    %vm62 = vcmask 64512
    %v64 = vsel %vm62, %v53, 0
    %vm66 = vcmask 1043456
    %v68 = vsel %vm66, %v54, 0
    %70 = vmatprep.subr.bf16.mxu0 0
    %71 = vmatpush1.bf16.msra.mxu0 %v68
    %72 = vmatprep.subr.bf16.mxu0 0
    %73 = vmatpush1.bf16.msra.mxu0 0
    %74 = vmatprep.subr.bf16.mxu0 0
    %75 = vmatpush1.bf16.msra.mxu0 0
    %76 = vmatprep.subr.bf16.mxu0 0
    %77 = vmatpush1.bf16.msra.mxu0 0
    %78 = vmatprep.subr.bf16.mxu0 0
    %79 = vmatpush1.bf16.msra.mxu0 0
    %80 = vmatprep.subr.bf16.mxu0 0
    %81 = vmatpush1.bf16.msra.mxu0 0
    %82 = vmatprep.subr.bf16.mxu0 0
    %83 = vmatpush1.bf16.msra.mxu0 0
    %84 = vmatprep.subr.bf16.mxu0 0
    %85 = vmatpush1.bf16.msra.mxu0 0
    %86 = vmatprep.subr.bf16.mxu0 0
    %87 = vmatpush1.bf16.msra.mxu0 0
    %88 = vmatprep.subr.bf16.mxu0 0
    %89 = vmatpush1.bf16.msra.mxu0 0
    %90 = vmatprep.subr.bf16.mxu0 0
    %91 = vmatpush1.bf16.msra.mxu0 0
    %92 = vmatprep.subr.bf16.mxu0 0
    %93 = vmatpush1.bf16.msra.mxu0 0
    %94 = vmatprep.subr.bf16.mxu0 0
    %95 = vmatpush1.bf16.msra.mxu0 0
    %96 = vmatprep.subr.bf16.mxu0 0
    %97 = vmatpush1.bf16.msra.mxu0 0
    %98 = vmatprep.subr.bf16.mxu0 0
    %99 = vmatpush1.bf16.msra.mxu0 0
    %100 = vmatprep.subr.bf16.mxu0 0
    %101 = vmatpush1.bf16.msra.mxu0 0
    %102 = vmatprep.mubr.bf16.mxu0 0
    %103 = vmatmul.mubr.bf16.gmra.mrb[0].mxu0 %v64
    %v104 = vpop.f32.mrb[0].mxu0
    %v105 = vadd.f32 %v60, %v104
    %v106 = vpop.f32.mrb[0].mxu0
    %v107 = vpop.f32.mrb[0].mxu0
    %v108 = vpop.f32.mrb[0].mxu0
    %109 = vdwg.mxu0
    %v110 = vmax.f32 %v105, 0.0
    %v111 = vpack.c.bf16 %v110, %v110
    %v112 = vld [vmem:[%s3] sm:$0xf]
    %v113 = vld [vmem:[%s3 + $0x4] sm:$0xf]
    %v114 = vld [vmem:[%s3 + $0x8] sm:$0xf]
    %v115 = vld [vmem:[%s3 + $0xc] sm:$0xf]
    %v116 = vld [vmem:[%s3 + $0x10] sm:$0xf]
    %v117 = vld [vmem:[%s3 + $0x14] sm:$0xf]
    %v118 = vld [vmem:[%s3 + $0x18] sm:$0xf]
    %v119 = vld [vmem:[%s3 + $0x1c] sm:$0xf]
    %v120 = vld [vmem:[%s4] sm:$0x1]
    %v122 = vlaneseq
    %v123 = vshrl.u32 %v122, 7
    %v124 = vsub.s32 0, %v123
    %v125 = vrot.slane %v120, %v124
    %v135 = vunpack.c.l.b16 %v112
    %v136 = vunpack.c.l.b16 %v113
    %v137 = vunpack.c.l.b16 %v114
    %v138 = vunpack.c.l.b16 %v115
    %v139 = vunpack.c.l.b16 %v116
    %v140 = vunpack.c.l.b16 %v117
    %v141 = vunpack.c.l.b16 %v118
    %v142 = vunpack.c.l.b16 %v119
    %v143 = vpack.c.b16 %v136, %v135
    %v144 = vpack.c.b16 %v138, %v137
    %v145 = vpack.c.b16 %v140, %v139
    %v146 = vpack.c.b16 %v142, %v141
    %vm151 = vcmask 523264
    %v153 = vsel %vm151, %v111, 0
    %155 = vmatprep.subr.bf16.mxu0 0
    %156 = vmatpush1.bf16.msra.mxu0 %v143
    %157 = vmatprep.subr.bf16.mxu0 0
    %158 = vmatpush1.bf16.msra.mxu0 %v144
    %159 = vmatprep.subr.bf16.mxu0 0
    %160 = vmatpush1.bf16.msra.mxu0 %v145
    %161 = vmatprep.subr.bf16.mxu0 0
    %162 = vmatpush1.bf16.msra.mxu0 %v146
    %163 = vmatprep.subr.bf16.mxu0 0
    %164 = vmatpush1.bf16.msra.mxu0 0
    %165 = vmatprep.subr.bf16.mxu0 0
    %166 = vmatpush1.bf16.msra.mxu0 0
    %167 = vmatprep.subr.bf16.mxu0 0
    %168 = vmatpush1.bf16.msra.mxu0 0
    %169 = vmatprep.subr.bf16.mxu0 0
    %170 = vmatpush1.bf16.msra.mxu0 0
    %171 = vmatprep.subr.bf16.mxu0 0
    %172 = vmatpush1.bf16.msra.mxu0 0
    %173 = vmatprep.subr.bf16.mxu0 0
    %174 = vmatpush1.bf16.msra.mxu0 0
    %175 = vmatprep.subr.bf16.mxu0 0
    %176 = vmatpush1.bf16.msra.mxu0 0
    %177 = vmatprep.subr.bf16.mxu0 0
    %178 = vmatpush1.bf16.msra.mxu0 0
    %179 = vmatprep.subr.bf16.mxu0 0
    %180 = vmatpush1.bf16.msra.mxu0 0
    %181 = vmatprep.subr.bf16.mxu0 0
    %182 = vmatpush1.bf16.msra.mxu0 0
    %183 = vmatprep.subr.bf16.mxu0 0
    %184 = vmatpush1.bf16.msra.mxu0 0
    %185 = vmatprep.subr.bf16.mxu0 0
    %186 = vmatpush1.bf16.msra.mxu0 0
    %187 = vmatprep.mubr.bf16.mxu0 0
    %188 = vmatmul.mubr.bf16.gmra.mrb[0].mxu0 %v153
    %v189 = vpop.f32.mrb[0].mxu0
    %v190 = vadd.f32 %v125, %v189
    %v191 = vpop.f32.mrb[0].mxu0
    %v192 = vpop.f32.mrb[0].mxu0
    %v193 = vpop.f32.mrb[0].mxu0
    %194 = vdwg.mxu0
    %v195 = vmax.f32 %v190, 0.0
    %v196 = vpack.c.bf16 %v195, %v195
    %v197 = vld [vmem:[%s5] sm:$0xf]
    %v198 = vld [vmem:[%s5 + $0x4] sm:$0xf]
    %v199 = vld [vmem:[%s5 + $0x8] sm:$0xf]
    %v200 = vld [vmem:[%s5 + $0xc] sm:$0xf]
    %v201 = vld [vmem:[%s5 + $0x10] sm:$0xf]
    %v202 = vld [vmem:[%s5 + $0x14] sm:$0xf]
    %v203 = vld [vmem:[%s5 + $0x18] sm:$0xf]
    %v204 = vld [vmem:[%s5 + $0x1c] sm:$0xf]
    %v205 = vld [vmem:[%s5 + $0x20] sm:$0xf]
    %v206 = vld [vmem:[%s5 + $0x24] sm:$0xf]
    %v207 = vld [vmem:[%s5 + $0x28] sm:$0xf]
    %v208 = vld [vmem:[%s5 + $0x2c] sm:$0xf]
    %v209 = vld [vmem:[%s5 + $0x30] sm:$0xf]
    %v210 = vld [vmem:[%s5 + $0x34] sm:$0xf]
    %v211 = vld [vmem:[%s5 + $0x38] sm:$0xf]
    %v212 = vld [vmem:[%s5 + $0x3c] sm:$0xf]
    %v213 = vld [vmem:[%s6] sm:$0x1]
    %v215 = vlaneseq
    %v216 = vshrl.u32 %v215, 7
    %v217 = vsub.s32 0, %v216
    %v218 = vrot.slane %v213, %v217
    %v236 = vunpack.c.l.b16 %v197
    %v237 = vunpack.c.l.b16 %v198
    %v238 = vunpack.c.l.b16 %v199
    %v239 = vunpack.c.l.b16 %v200
    %v240 = vunpack.c.l.b16 %v201
    %v241 = vunpack.c.l.b16 %v202
    %v242 = vunpack.c.l.b16 %v203
    %v243 = vunpack.c.l.b16 %v204
    %v244 = vunpack.c.l.b16 %v205
    %v245 = vunpack.c.l.b16 %v206
    %v246 = vunpack.c.l.b16 %v207
    %v247 = vunpack.c.l.b16 %v208
    %v248 = vunpack.c.l.b16 %v209
    %v249 = vunpack.c.l.b16 %v210
    %v250 = vunpack.c.l.b16 %v211
    %v251 = vunpack.c.l.b16 %v212
    %v252 = vpack.c.b16 %v237, %v236
    %v253 = vpack.c.b16 %v239, %v238
    %v254 = vpack.c.b16 %v241, %v240
    %v255 = vpack.c.b16 %v243, %v242
    %v256 = vpack.c.b16 %v245, %v244
    %v257 = vpack.c.b16 %v247, %v246
    %v258 = vpack.c.b16 %v249, %v248
    %v259 = vpack.c.b16 %v251, %v250
    %268 = vmatprep.subr.bf16.mxu0 0
    %269 = vmatpush1.bf16.msra.mxu0 %v252
    %270 = vmatprep.subr.bf16.mxu0 0
    %271 = vmatpush1.bf16.msra.mxu0 %v253
    %272 = vmatprep.subr.bf16.mxu0 0
    %273 = vmatpush1.bf16.msra.mxu0 %v254
    %274 = vmatprep.subr.bf16.mxu0 0
    %275 = vmatpush1.bf16.msra.mxu0 %v255
    %276 = vmatprep.subr.bf16.mxu0 0
    %277 = vmatpush1.bf16.msra.mxu0 %v256
    %278 = vmatprep.subr.bf16.mxu0 0
    %279 = vmatpush1.bf16.msra.mxu0 %v257
    %280 = vmatprep.subr.bf16.mxu0 0
    %281 = vmatpush1.bf16.msra.mxu0 %v258
    %282 = vmatprep.subr.bf16.mxu0 0
    %283 = vmatpush1.bf16.msra.mxu0 %v259
    %284 = vmatprep.subr.bf16.mxu0 0
    %285 = vmatpush1.bf16.msra.mxu0 0
    %286 = vmatprep.subr.bf16.mxu0 0
    %287 = vmatpush1.bf16.msra.mxu0 0
    %288 = vmatprep.subr.bf16.mxu0 0
    %289 = vmatpush1.bf16.msra.mxu0 0
    %290 = vmatprep.subr.bf16.mxu0 0
    %291 = vmatpush1.bf16.msra.mxu0 0
    %292 = vmatprep.subr.bf16.mxu0 0
    %293 = vmatpush1.bf16.msra.mxu0 0
    %294 = vmatprep.subr.bf16.mxu0 0
    %295 = vmatpush1.bf16.msra.mxu0 0
    %296 = vmatprep.subr.bf16.mxu0 0
    %297 = vmatpush1.bf16.msra.mxu0 0
    %298 = vmatprep.subr.bf16.mxu0 0
    %299 = vmatpush1.bf16.msra.mxu0 0
    %300 = vmatprep.mubr.bf16.mxu0 0
    %301 = vmatmul.mubr.bf16.gmra.mrb[0].mxu0 %v196
    %v302 = vpop.f32.mrb[0].mxu0
    %v303 = vadd.f32 %v218, %v302
    %v304 = vpop.f32.mrb[0].mxu0
    %v305 = vpop.f32.mrb[0].mxu0
    %v306 = vpop.f32.mrb[0].mxu0
    %307 = vdwg.mxu0
    %v308 = vmax.f32 %v303, 0.0
    %v309 = vpack.c.bf16 %v308, %v308
    %v310 = vld [vmem:[#allocation2] sm:$0xf]
    %v311 = vld [vmem:[#allocation2 + $0x4] sm:$0xf]
    %v312 = vld [vmem:[#allocation2 + $0x8] sm:$0xf]
    %v313 = vld [vmem:[#allocation2 + $0xc] sm:$0xf]
    %v314 = vld [vmem:[#allocation2 + $0x10] sm:$0xf]
    %v315 = vld [vmem:[#allocation2 + $0x14] sm:$0xf]
    %v316 = vld [vmem:[#allocation2 + $0x18] sm:$0xf]
    %v317 = vld [vmem:[#allocation2 + $0x1c] sm:$0xf]
    %v318 = vld [vmem:[#allocation2 + $0x20] sm:$0xf]
    %v319 = vld [vmem:[#allocation2 + $0x24] sm:$0xf]
    %v320 = vld [vmem:[#allocation2 + $0x28] sm:$0xf]
    %v321 = vld [vmem:[#allocation2 + $0x2c] sm:$0xf]
    %v322 = vld [vmem:[#allocation2 + $0x30] sm:$0xf]
    %v323 = vld [vmem:[#allocation2 + $0x34] sm:$0xf]
    %v324 = vld [vmem:[#allocation2 + $0x38] sm:$0xf]
    %v325 = vld [vmem:[#allocation2 + $0x3c] sm:$0xf]
    %v326 = vld [vmem:[%s8] sm:$0x1]
    %v328 = vlaneseq
    %v329 = vshrl.u32 %v328, 7
    %v330 = vsub.s32 0, %v329
    %v331 = vrot.slane %v326, %v330
    %v349 = vunpack.c.l.b16 %v310
    %v350 = vunpack.c.l.b16 %v311
    %v351 = vunpack.c.l.b16 %v312
    %v352 = vunpack.c.l.b16 %v313
    %v353 = vunpack.c.l.b16 %v314
    %v354 = vunpack.c.l.b16 %v315
    %v355 = vunpack.c.l.b16 %v316
    %v356 = vunpack.c.l.b16 %v317
    %v357 = vunpack.c.l.b16 %v318
    %v358 = vunpack.c.l.b16 %v319
    %v359 = vunpack.c.l.b16 %v320
    %v360 = vunpack.c.l.b16 %v321
    %v361 = vunpack.c.l.b16 %v322
    %v362 = vunpack.c.l.b16 %v323
    %v363 = vunpack.c.l.b16 %v324
    %v364 = vunpack.c.l.b16 %v325
    %v365 = vpack.c.b16 %v350, %v349
    %v366 = vpack.c.b16 %v352, %v351
    %v367 = vpack.c.b16 %v354, %v353
    %v368 = vpack.c.b16 %v356, %v355
    %v369 = vpack.c.b16 %v358, %v357
    %v370 = vpack.c.b16 %v360, %v359
    %v371 = vpack.c.b16 %v362, %v361
    %v372 = vpack.c.b16 %v364, %v363
    %381 = vmatprep.subr.bf16.mxu0 0
    %382 = vmatpush1.bf16.msra.mxu0 %v365
    %383 = vmatprep.subr.bf16.mxu0 0
    %384 = vmatpush1.bf16.msra.mxu0 %v366
    %385 = vmatprep.subr.bf16.mxu0 0
    %386 = vmatpush1.bf16.msra.mxu0 %v367
    %387 = vmatprep.subr.bf16.mxu0 0
    %388 = vmatpush1.bf16.msra.mxu0 %v368
    %389 = vmatprep.subr.bf16.mxu0 0
    %390 = vmatpush1.bf16.msra.mxu0 %v369
    %391 = vmatprep.subr.bf16.mxu0 0
    %392 = vmatpush1.bf16.msra.mxu0 %v370
    %393 = vmatprep.subr.bf16.mxu0 0
    %394 = vmatpush1.bf16.msra.mxu0 %v371
    %395 = vmatprep.subr.bf16.mxu0 0
    %396 = vmatpush1.bf16.msra.mxu0 %v372
    %397 = vmatprep.subr.bf16.mxu0 0
    %398 = vmatpush1.bf16.msra.mxu0 0
    %399 = vmatprep.subr.bf16.mxu0 0
    %400 = vmatpush1.bf16.msra.mxu0 0
    %401 = vmatprep.subr.bf16.mxu0 0
    %402 = vmatpush1.bf16.msra.mxu0 0
    %403 = vmatprep.subr.bf16.mxu0 0
    %404 = vmatpush1.bf16.msra.mxu0 0
    %405 = vmatprep.subr.bf16.mxu0 0
    %406 = vmatpush1.bf16.msra.mxu0 0
    %407 = vmatprep.subr.bf16.mxu0 0
    %408 = vmatpush1.bf16.msra.mxu0 0
    %409 = vmatprep.subr.bf16.mxu0 0
    %410 = vmatpush1.bf16.msra.mxu0 0
    %411 = vmatprep.subr.bf16.mxu0 0
    %412 = vmatpush1.bf16.msra.mxu0 0
    %413 = vmatprep.mubr.bf16.mxu0 0
    %414 = vmatmul.mubr.bf16.gmra.mrb[0].mxu0 %v309
    %v415 = vpop.f32.mrb[0].mxu0
    %v416 = vadd.f32 %v331, %v415
    %v417 = vpop.f32.mrb[0].mxu0
    %v418 = vpop.f32.mrb[0].mxu0
    %v419 = vpop.f32.mrb[0].mxu0
    %420 = vdwg.mxu0
    %v421 = vmax.f32 %v416, 0.0
    %v422 = vpack.c.bf16 %v421, %v421
    %v423 = vld [vmem:[%s9] sm:$0xf]
    %v424 = vld [vmem:[%s9 + $0x4] sm:$0xf]
    %v425 = vld [vmem:[%s9 + $0x8] sm:$0xf]
    %v426 = vld [vmem:[%s9 + $0xc] sm:$0xf]
    %v427 = vld [vmem:[%s9 + $0x10] sm:$0xf]
    %v428 = vld [vmem:[%s9 + $0x14] sm:$0xf]
    %v429 = vld [vmem:[%s9 + $0x18] sm:$0xf]
    %v430 = vld [vmem:[%s9 + $0x1c] sm:$0xf]
    %v431 = vld [vmem:[%s9 + $0x20] sm:$0xf]
    %v432 = vld [vmem:[%s9 + $0x24] sm:$0xf]
    %v433 = vld [vmem:[%s9 + $0x28] sm:$0xf]
    %v434 = vld [vmem:[%s9 + $0x2c] sm:$0xf]
    %v435 = vld [vmem:[%s9 + $0x30] sm:$0xf]
    %v436 = vld [vmem:[%s9 + $0x34] sm:$0xf]
    %v437 = vld [vmem:[%s9 + $0x38] sm:$0xf]
    %v438 = vld [vmem:[%s9 + $0x3c] sm:$0xf]
    %v439 = vld [vmem:[%s10] sm:$0x1]
    %v441 = vlaneseq
    %v442 = vshrl.u32 %v441, 7
    %v443 = vsub.s32 0, %v442
    %v444 = vrot.slane %v439, %v443
    %v462 = vunpack.c.l.b16 %v423
    %v463 = vunpack.c.l.b16 %v424
    %v464 = vunpack.c.l.b16 %v425
    %v465 = vunpack.c.l.b16 %v426
    %v466 = vunpack.c.l.b16 %v427
    %v467 = vunpack.c.l.b16 %v428
    %v468 = vunpack.c.l.b16 %v429
    %v469 = vunpack.c.l.b16 %v430
    %v470 = vunpack.c.l.b16 %v431
    %v471 = vunpack.c.l.b16 %v432
    %v472 = vunpack.c.l.b16 %v433
    %v473 = vunpack.c.l.b16 %v434
    %v474 = vunpack.c.l.b16 %v435
    %v475 = vunpack.c.l.b16 %v436
    %v476 = vunpack.c.l.b16 %v437
    %v477 = vunpack.c.l.b16 %v438
    %v478 = vpack.c.b16 %v463, %v462
    %v479 = vpack.c.b16 %v465, %v464
    %v480 = vpack.c.b16 %v467, %v466
    %v481 = vpack.c.b16 %v469, %v468
    %v482 = vpack.c.b16 %v471, %v470
    %v483 = vpack.c.b16 %v473, %v472
    %v484 = vpack.c.b16 %v475, %v474
    %v485 = vpack.c.b16 %v477, %v476
    %494 = vmatprep.subr.bf16.mxu0 0
    %495 = vmatpush1.bf16.msra.mxu0 %v478
    %496 = vmatprep.subr.bf16.mxu0 0
    %497 = vmatpush1.bf16.msra.mxu0 %v479
    %498 = vmatprep.subr.bf16.mxu0 0
    %499 = vmatpush1.bf16.msra.mxu0 %v480
    %500 = vmatprep.subr.bf16.mxu0 0
    %501 = vmatpush1.bf16.msra.mxu0 %v481
    %502 = vmatprep.subr.bf16.mxu0 0
    %503 = vmatpush1.bf16.msra.mxu0 %v482
    %504 = vmatprep.subr.bf16.mxu0 0
    %505 = vmatpush1.bf16.msra.mxu0 %v483
    %506 = vmatprep.subr.bf16.mxu0 0
    %507 = vmatpush1.bf16.msra.mxu0 %v484
    %508 = vmatprep.subr.bf16.mxu0 0
    %509 = vmatpush1.bf16.msra.mxu0 %v485
    %510 = vmatprep.subr.bf16.mxu0 0
    %511 = vmatpush1.bf16.msra.mxu0 0
    %512 = vmatprep.subr.bf16.mxu0 0
    %513 = vmatpush1.bf16.msra.mxu0 0
    %514 = vmatprep.subr.bf16.mxu0 0
    %515 = vmatpush1.bf16.msra.mxu0 0
    %516 = vmatprep.subr.bf16.mxu0 0
    %517 = vmatpush1.bf16.msra.mxu0 0
    %518 = vmatprep.subr.bf16.mxu0 0
    %519 = vmatpush1.bf16.msra.mxu0 0
    %520 = vmatprep.subr.bf16.mxu0 0
    %521 = vmatpush1.bf16.msra.mxu0 0
    %522 = vmatprep.subr.bf16.mxu0 0
    %523 = vmatpush1.bf16.msra.mxu0 0
    %524 = vmatprep.subr.bf16.mxu0 0
    %525 = vmatpush1.bf16.msra.mxu0 0
    %526 = vmatprep.mubr.bf16.mxu0 0
    %527 = vmatmul.mubr.bf16.gmra.mrb[0].mxu0 %v422
    %v528 = vpop.f32.mrb[0].mxu0
    %v529 = vadd.f32 %v444, %v528
    %v530 = vpop.f32.mrb[0].mxu0
    %v531 = vpop.f32.mrb[0].mxu0
    %v532 = vpop.f32.mrb[0].mxu0
    %533 = vdwg.mxu0
    %vm534 = vcmask 48128
    %535 = vst.msk [vmem:[%s11] sm:$0xff] %vm534, %v529
    // Predicated region
    $region50: #{conv_dqn_forward.1} parent=1 // pred_check
      _
    $region51: #{conv_dqn_forward.1} parent=1 // pred_check_branch
      %537 = sbr.rel (0) target = $region53
    $region52: #{conv_dqn_forward.1} parent=1 // pred_region
      _
    $region53: #{conv_dqn_forward.1} parent=1 // pred_fallthru
      _
    // Predicated region
    $region54: #{conv_dqn_forward.1} parent=1 // pred_check
      _
    $region55: #{conv_dqn_forward.1} parent=1 // pred_check_branch
      %539 = sbr.rel (0) target = $region57
    $region56: #{conv_dqn_forward.1} parent=1 // pred_region
      _
    $region57: #{conv_dqn_forward.1} parent=1 // pred_fallthru
      _
    %540 = vsyncpa [#allocation3], 1

</llo_original>
